<compile_context>
chip_gen: v7x
topology: tpu7x:2x2x1
jax: 0.10.0
libtpu: 0.0.40
codegen_flags: <defaults>
</compile_context>

<pallas_src>
import functools

import jax
import jax.numpy as jnp
from jax.experimental import pallas as pl
from jax.experimental.pallas import tpu as pltpu


def _round_up(x, m):
    return (x + m - 1) // m * m


# ----------------------------------------------------------------------------- #
# Fused kernel: normalize (f32) -> bf16 MXU matmul (f32 acc) -> * (1/temp)
# ----------------------------------------------------------------------------- #
def _mme_kernel(x_ref, w_ref, o_ref, *, inv_temp, eps):
    # x_ref: (tm, Dp) f32 rows; w_ref: (Dp, Cp) bf16; o_ref: (tm, Cp) f32
    x = x_ref[...]
    # F.normalize(x, p=2, dim=1): x / max(||x||_2, eps)   (eps = 1e-12)
    sq = jnp.sum(x * x, axis=-1, keepdims=True)
    denom = jnp.maximum(jnp.sqrt(sq), eps)
    y = (x / denom).astype(w_ref.dtype)  # bf16 MXU operands, f32 accumulate
    logits = jnp.dot(y, w_ref[...], preferred_element_type=jnp.float32)
    o_ref[...] = logits * inv_temp


# ----------------------------------------------------------------------------- #
# Wrapper (padding / tiling / slicing only)
# ----------------------------------------------------------------------------- #
def res_classifier_mme(x, weight, *, temp=0.05, return_feat=False):
    """Forward of ResClassifier_MME.

    x:      (N, input_size) activations
    weight: (num_classes, input_size) fc weight (bias=False)
    """
    if return_feat:  # forward(..., return_feat=True) just returns x
        return x

    n, d = x.shape
    c, d2 = weight.shape
    assert d == d2, "weight / input feature dims mismatch"

    dp = _round_up(d, 128)                       # K padded to lane multiple
    cp = _round_up(c, 128)                       # lane-dense output columns
    tm = 128 if n >= 128 else _round_up(max(n, 1), 8)
    np_ = _round_up(n, tm)

    x_p = jnp.pad(x.astype(jnp.float32), ((0, np_ - n), (0, dp - d)))
    w_t = jnp.pad(weight.astype(jnp.bfloat16).T, ((0, dp - d), (0, cp - c)))

    kernel = functools.partial(_mme_kernel, inv_temp=1.0 / temp, eps=1e-12)
    cost = pl.CostEstimate(
        flops=2 * np_ * dp * cp + 3 * np_ * dp,
        transcendentals=np_,
        bytes_accessed=x_p.size * 4 + w_t.size * 2 + np_ * cp * 4,
    )

    out = pl.pallas_call(
        kernel,
        out_shape=jax.ShapeDtypeStruct((np_, cp), jnp.float32),
        grid=(np_ // tm,),
        in_specs=[
            pl.BlockSpec((tm, dp), lambda i: (i, 0)),   # activation row tile
            pl.BlockSpec((dp, cp), lambda i: (0, 0)),   # full (padded) weight
        ],
        out_specs=pl.BlockSpec((tm, cp), lambda i: (i, 0)),
        compiler_params=pltpu.CompilerParams(
            dimension_semantics=("parallel",),          # both TCs on v7x
        ),
        cost_estimate=cost,
    )(x_p, w_t)

    return out[:n, :c]


# ----------------------------------------------------------------------------- #
# Example run
# ----------------------------------------------------------------------------- #
if __name__ == "__main__":
    key = jax.random.PRNGKey(0)
    wkey, xkey = jax.random.split(key)

    num_classes, input_size, temp = 12, 2048, 0.05   # module defaults
    batch = 4

    # weights_init: m.weight.data.normal_(0.0, 0.1)
    weight = jax.random.normal(wkey, (num_classes, input_size), jnp.float32) * 0.1
    x = jax.random.normal(xkey, (batch, input_size), jnp.float32)

    fwd = jax.jit(functools.partial(res_classifier_mme, temp=temp))
    out = fwd(x, weight)
    jax.block_until_ready(out)

    # pure-JAX reference (f32) to sanity-check the fused bf16-MXU kernel
    norm = jnp.maximum(jnp.linalg.norm(x, axis=1, keepdims=True), 1e-12)
    ref = (x / norm) @ weight.T / temp
    err = float(jnp.max(jnp.abs(out - ref)))

    assert out.shape == (batch, num_classes) and out.dtype == jnp.float32
    assert err < 1e-1, f"max abs err {err}"
    print("KERNEL_OK")
</pallas_src>

<mosaic_0001>
module attributes {stable_mosaic.version = 11 : i64} {
  func.func @_mme_kernel(%arg0: i32, %arg1: memref<8x2048xf32, #tpu.memory_space<vmem>>, %arg2: memref<2048x128xbf16, #tpu.memory_space<vmem>>, %arg3: memref<8x128xf32, #tpu.memory_space<vmem>>) attributes {dimension_semantics = [#tpu.dimension_semantics<parallel>], iteration_bounds = array<i64: 1>, scalar_prefetch = 0 : i64, scratch_operands = 0 : i64, tpu.core_type = #tpu.core_type<tc>, window_params = [{transform_indices = @transform_0, window_bounds = array<i64: 8, 2048>}, {pipeline_mode = #tpu.pipeline_mode<synchronous>, transform_indices = @transform_1, window_bounds = array<i64: 2048, 128>}, {transform_indices = @transform_2, window_bounds = array<i64: 8, 128>}]} {
    %c0 = arith.constant 0 : index
    %c0_0 = arith.constant 0 : index
    %0 = vector.load %arg1[%c0, %c0_0] : memref<8x2048xf32, #tpu.memory_space<vmem>>, vector<8x2048xf32>
    %1 = arith.mulf %0, %0 : vector<8x2048xf32>
    %cst = arith.constant dense<0.000000e+00> : vector<8xf32>
    %2 = vector.multi_reduction <add>, %1, %cst [1] : vector<8x2048xf32> to vector<8xf32>
    %3 = vector.shape_cast %2 : vector<8xf32> to vector<8x1xf32>
    %4 = math.sqrt %3 : vector<8x1xf32>
    %cst_1 = arith.constant 9.99999996E-13 : f32
    %5 = vector.broadcast %cst_1 : f32 to vector<8x1xf32>
    %6 = arith.maximumf %4, %5 : vector<8x1xf32>
    %7 = vector.broadcast %6 : vector<8x1xf32> to vector<8x2048xf32>
    %8 = arith.divf %0, %7 : vector<8x2048xf32>
    %9 = arith.truncf %8 : vector<8x2048xf32> to vector<8x2048xbf16>
    %c0_2 = arith.constant 0 : index
    %c0_3 = arith.constant 0 : index
    %10 = vector.load %arg2[%c0_2, %c0_3] : memref<2048x128xbf16, #tpu.memory_space<vmem>>, vector<2048x128xbf16>
    %cst_4 = arith.constant dense<0.000000e+00> : vector<8x128xf32>
    %11 = tpu.matmul %9, %10, %cst_4 {dimension_numbers = #tpu.dot_dimension_numbers<[1], [0], [0], [1], [0, 0, 1, 1], [], []>} : vector<8x2048xbf16>, vector<2048x128xbf16>, vector<8x128xf32> -> vector<8x128xf32>
    %cst_5 = arith.constant 2.000000e+01 : f32
    %12 = vector.broadcast %cst_5 : f32 to vector<8x128xf32>
    %13 = arith.mulf %11, %12 : vector<8x128xf32>
    %c0_6 = arith.constant 0 : index
    %c0_7 = arith.constant 0 : index
    %14 = vector.load %arg3[%c0_6, %c0_7] : memref<8x128xf32, #tpu.memory_space<vmem>>, vector<8x128xf32>
    tpu.vector_store %arg3[%c0_6, %c0_7], %13 {strides = array<i32>} : memref<8x128xf32, #tpu.memory_space<vmem>>, vector<8x128xf32>,
    return
  }
  func.func @transform_0(%arg0: i32) -> (i32, i32) {
    %c0_i32 = arith.constant 0 : i32
    %c0_i32_0 = arith.constant 0 : i32
    return %arg0, %c0_i32 : i32, i32
  }
  func.func @transform_1(%arg0: i32) -> (i32, i32) {
    %c0_i32 = arith.constant 0 : i32
    %c0_i32_0 = arith.constant 0 : i32
    %c0_i32_1 = arith.constant 0 : i32
    return %c0_i32, %c0_i32_0 : i32, i32
  }
  func.func @transform_2(%arg0: i32) -> (i32, i32) {
    %c0_i32 = arith.constant 0 : i32
    %c0_i32_0 = arith.constant 0 : i32
    return %arg0, %c0_i32 : i32, i32
  }
}

</mosaic_0001>

<llo_original>
// kernel: res_classifier_mme.1
$region0: #{res_classifier_mme.1}
  #allocation0 [shape = 'u32[]', space=smem, size = 0x4, offset = 0x4, fixed_abs, tag = 'smem constant byte address 0x4 - core index']
  #allocation1 [shape = 'u32[144,128]{1,0:T(1,128)}', space=vmem, size = 0x12000, scoped, tag = 'internal scratch']
  %s0 = inlined_call_operand.vmem [shape: f32[8,2048], index: 0, kind: input, shape index: {}]
  %s1 = inlined_call_operand.vmem [shape: bf16[2048,128], index: 1, kind: input, shape index: {}]
  %s2 = inlined_call_operand.vmem [shape: f32[8,128], index: 2, kind: output, shape index: {}]
  %s3 = sld [smem:[#allocation0]]
  $region18: #{res_classifier_mme.1} parent=0
    _
  %s5 = ssub.s32 1, %s3
  %s6 = scalar_select 0, %s5, %s3
  // Predicated region
  $region2: #{res_classifier_mme.1} parent=0 // pred_check
    _
  $region3: #{res_classifier_mme.1} parent=0 // pred_check_branch
    %8 = sbr.rel (0) target = $region5
  $region4: #{res_classifier_mme.1} parent=0 // pred_region
    _
  $region5: #{res_classifier_mme.1} parent=0 // pred_fallthru
    _
  // Predicated region
  $region6: #{res_classifier_mme.1} parent=0 // pred_check
    _
  $region7: #{res_classifier_mme.1} parent=0 // pred_check_branch
    %10 = sbr.rel (0) target = $region9
  $region8: #{res_classifier_mme.1} parent=0 // pred_region
    _
  $region9: #{res_classifier_mme.1} parent=0 // pred_fallthru
    _
  %v12 = vld [vmem:[%s0] sm:$0xff]
  %v13 = vld [vmem:[%s0 + $0x8] sm:$0xff]
  %v14 = vld [vmem:[%s0 + $0x10] sm:$0xff]
  %v15 = vld [vmem:[%s0 + $0x18] sm:$0xff]
  %v16 = vld [vmem:[%s0 + $0x20] sm:$0xff]
  %v17 = vld [vmem:[%s0 + $0x28] sm:$0xff]
  %v18 = vld [vmem:[%s0 + $0x30] sm:$0xff]
  %v19 = vld [vmem:[%s0 + $0x38] sm:$0xff]
  %v20 = vld [vmem:[%s0 + $0x40] sm:$0xff]
  %v21 = vld [vmem:[%s0 + $0x48] sm:$0xff]
  %v22 = vld [vmem:[%s0 + $0x50] sm:$0xff]
  %v23 = vld [vmem:[%s0 + $0x58] sm:$0xff]
  %v24 = vld [vmem:[%s0 + $0x60] sm:$0xff]
  %v25 = vld [vmem:[%s0 + $0x68] sm:$0xff]
  %v26 = vld [vmem:[%s0 + $0x70] sm:$0xff]
  %v27 = vld [vmem:[%s0 + $0x78] sm:$0xff]
  %v28 = vmul.f32 %v12, %v12
  %v29 = vmul.f32 %v13, %v13
  %v30 = vmul.f32 %v14, %v14
  %v31 = vmul.f32 %v15, %v15
  %v32 = vmul.f32 %v16, %v16
  %v33 = vmul.f32 %v17, %v17
  %v34 = vmul.f32 %v18, %v18
  %v35 = vmul.f32 %v19, %v19
  %v36 = vmul.f32 %v20, %v20
  %v37 = vmul.f32 %v21, %v21
  %v38 = vmul.f32 %v22, %v22
  %v39 = vmul.f32 %v23, %v23
  %v40 = vmul.f32 %v24, %v24
  %v41 = vmul.f32 %v25, %v25
  %v42 = vmul.f32 %v26, %v26
  %v43 = vmul.f32 %v27, %v27
  %v44 = vadd.f32 %v28, %v29
  %v45 = vadd.f32 %v44, %v30
  %v46 = vadd.f32 %v45, %v31
  %v47 = vadd.f32 %v46, %v32
  %v48 = vadd.f32 %v47, %v33
  %v49 = vadd.f32 %v48, %v34
  %v50 = vadd.f32 %v49, %v35
  %v51 = vadd.f32 %v50, %v36
  %v52 = vadd.f32 %v51, %v37
  %v53 = vadd.f32 %v52, %v38
  %v54 = vadd.f32 %v53, %v39
  %v55 = vadd.f32 %v54, %v40
  %v56 = vadd.f32 %v55, %v41
  %v57 = vadd.f32 %v56, %v42
  %v58 = vadd.f32 %v57, %v43
  %59 = vadd.xlane.f32.xlu0 %v58
  %v60 = vpop.xlane.xlu0 %59
  %v61 = vrsqrt.pop %v60
  %v62 = vmul.f32 %v60, %v61
  %vm63 = vcmp.eq.f32.partialorder %v60, inf
  %v64 = vsel %vm63, %v60, %v62
  %vm65 = vcmp.eq.f32.partialorder %v60, 0.0
  %v66 = vand.u32 %v60, 2147483648
  %v67 = vsel %vm65, %v66, %v64
  %v68 = vmax.f32 %v67, 1e-12
  %v69 = vrcp.pop %v68
  %v70 = vmul.f32 %v12, %v69
  %v71 = vmul.f32 %v13, %v69
  %v72 = vmul.f32 %v14, %v69
  %v73 = vmul.f32 %v15, %v69
  %v74 = vmul.f32 %v16, %v69
  %v75 = vmul.f32 %v17, %v69
  %v76 = vmul.f32 %v18, %v69
  %v77 = vmul.f32 %v19, %v69
  %v78 = vmul.f32 %v20, %v69
  %v79 = vmul.f32 %v21, %v69
  %v80 = vmul.f32 %v22, %v69
  %v81 = vmul.f32 %v23, %v69
  %v82 = vmul.f32 %v24, %v69
  %v83 = vmul.f32 %v25, %v69
  %v84 = vmul.f32 %v26, %v69
  %v85 = vmul.f32 %v27, %v69
  %v86 = vpack.c.bf16 %v70, %v70
  %v87 = vpack.c.bf16 %v71, %v71
  %v88 = vpack.c.bf16 %v72, %v72
  %v89 = vpack.c.bf16 %v73, %v73
  %v90 = vpack.c.bf16 %v74, %v74
  %v91 = vpack.c.bf16 %v75, %v75
  %v92 = vpack.c.bf16 %v76, %v76
  %v93 = vpack.c.bf16 %v77, %v77
  %v94 = vpack.c.bf16 %v78, %v78
  %v95 = vpack.c.bf16 %v79, %v79
  %v96 = vpack.c.bf16 %v80, %v80
  %v97 = vpack.c.bf16 %v81, %v81
  %v98 = vpack.c.bf16 %v82, %v82
  %v99 = vpack.c.bf16 %v83, %v83
  %v100 = vpack.c.bf16 %v84, %v84
  %v101 = vpack.c.bf16 %v85, %v85
  %v102 = vld [vmem:[%s1] sm:$0xf]
  %v103 = vld [vmem:[%s1 + $0x4] sm:$0xf]
  %v104 = vld [vmem:[%s1 + $0x8] sm:$0xf]
  %v105 = vld [vmem:[%s1 + $0xc] sm:$0xf]
  %v106 = vld [vmem:[%s1 + $0x10] sm:$0xf]
  %v107 = vld [vmem:[%s1 + $0x14] sm:$0xf]
  %v108 = vld [vmem:[%s1 + $0x18] sm:$0xf]
  %v109 = vld [vmem:[%s1 + $0x1c] sm:$0xf]
  %v110 = vld [vmem:[%s1 + $0x20] sm:$0xf]
  %v111 = vld [vmem:[%s1 + $0x24] sm:$0xf]
  %v112 = vld [vmem:[%s1 + $0x28] sm:$0xf]
  %v113 = vld [vmem:[%s1 + $0x2c] sm:$0xf]
  %v114 = vld [vmem:[%s1 + $0x30] sm:$0xf]
  %v115 = vld [vmem:[%s1 + $0x34] sm:$0xf]
  %v116 = vld [vmem:[%s1 + $0x38] sm:$0xf]
  %v117 = vld [vmem:[%s1 + $0x3c] sm:$0xf]
  %v118 = vld [vmem:[%s1 + $0x40] sm:$0xf]
  %v119 = vld [vmem:[%s1 + $0x44] sm:$0xf]
  %v120 = vld [vmem:[%s1 + $0x48] sm:$0xf]
  %v121 = vld [vmem:[%s1 + $0x4c] sm:$0xf]
  %v122 = vld [vmem:[%s1 + $0x50] sm:$0xf]
  %v123 = vld [vmem:[%s1 + $0x54] sm:$0xf]
  %v124 = vld [vmem:[%s1 + $0x58] sm:$0xf]
  %v125 = vld [vmem:[%s1 + $0x5c] sm:$0xf]
  %v126 = vld [vmem:[%s1 + $0x60] sm:$0xf]
  %v127 = vld [vmem:[%s1 + $0x64] sm:$0xf]
  %v128 = vld [vmem:[%s1 + $0x68] sm:$0xf]
  %v129 = vld [vmem:[%s1 + $0x6c] sm:$0xf]
  %v130 = vld [vmem:[%s1 + $0x70] sm:$0xf]
  %v131 = vld [vmem:[%s1 + $0x74] sm:$0xf]
  %v132 = vld [vmem:[%s1 + $0x78] sm:$0xf]
  %v133 = vld [vmem:[%s1 + $0x7c] sm:$0xf]
  %v134 = vld [vmem:[%s1 + $0x80] sm:$0xf]
  %v135 = vld [vmem:[%s1 + $0x84] sm:$0xf]
  %v136 = vld [vmem:[%s1 + $0x88] sm:$0xf]
  %v137 = vld [vmem:[%s1 + $0x8c] sm:$0xf]
  %v138 = vld [vmem:[%s1 + $0x90] sm:$0xf]
  %v139 = vld [vmem:[%s1 + $0x94] sm:$0xf]
  %v140 = vld [vmem:[%s1 + $0x98] sm:$0xf]
  %v141 = vld [vmem:[%s1 + $0x9c] sm:$0xf]
  %v142 = vld [vmem:[%s1 + $0xa0] sm:$0xf]
  %v143 = vld [vmem:[%s1 + $0xa4] sm:$0xf]
  %v144 = vld [vmem:[%s1 + $0xa8] sm:$0xf]
  %v145 = vld [vmem:[%s1 + $0xac] sm:$0xf]
  %v146 = vld [vmem:[%s1 + $0xb0] sm:$0xf]
  %v147 = vld [vmem:[%s1 + $0xb4] sm:$0xf]
  %v148 = vld [vmem:[%s1 + $0xb8] sm:$0xf]
  %v149 = vld [vmem:[%s1 + $0xbc] sm:$0xf]
  %v150 = vld [vmem:[%s1 + $0xc0] sm:$0xf]
  %v151 = vld [vmem:[%s1 + $0xc4] sm:$0xf]
  %v152 = vld [vmem:[%s1 + $0xc8] sm:$0xf]
  %v153 = vld [vmem:[%s1 + $0xcc] sm:$0xf]
  %v154 = vld [vmem:[%s1 + $0xd0] sm:$0xf]
  %v155 = vld [vmem:[%s1 + $0xd4] sm:$0xf]
  %v156 = vld [vmem:[%s1 + $0xd8] sm:$0xf]
  %v157 = vld [vmem:[%s1 + $0xdc] sm:$0xf]
  %v158 = vld [vmem:[%s1 + $0xe0] sm:$0xf]
  %v159 = vld [vmem:[%s1 + $0xe4] sm:$0xf]
  %v160 = vld [vmem:[%s1 + $0xe8] sm:$0xf]
  %v161 = vld [vmem:[%s1 + $0xec] sm:$0xf]
  %v162 = vld [vmem:[%s1 + $0xf0] sm:$0xf]
  %v163 = vld [vmem:[%s1 + $0xf4] sm:$0xf]
  %v164 = vld [vmem:[%s1 + $0xf8] sm:$0xf]
  %v165 = vld [vmem:[%s1 + $0xfc] sm:$0xf]
  %v166 = vld [vmem:[%s1 + $0x100] sm:$0xf]
  %v167 = vld [vmem:[%s1 + $0x104] sm:$0xf]
  %v168 = vld [vmem:[%s1 + $0x108] sm:$0xf]
  %v169 = vld [vmem:[%s1 + $0x10c] sm:$0xf]
  %v170 = vld [vmem:[%s1 + $0x110] sm:$0xf]
  %v171 = vld [vmem:[%s1 + $0x114] sm:$0xf]
  %v172 = vld [vmem:[%s1 + $0x118] sm:$0xf]
  %v173 = vld [vmem:[%s1 + $0x11c] sm:$0xf]
  %v174 = vld [vmem:[%s1 + $0x120] sm:$0xf]
  %v175 = vld [vmem:[%s1 + $0x124] sm:$0xf]
  %v176 = vld [vmem:[%s1 + $0x128] sm:$0xf]
  %v177 = vld [vmem:[%s1 + $0x12c] sm:$0xf]
  %v178 = vld [vmem:[%s1 + $0x130] sm:$0xf]
  %v179 = vld [vmem:[%s1 + $0x134] sm:$0xf]
  %v180 = vld [vmem:[%s1 + $0x138] sm:$0xf]
  %v181 = vld [vmem:[%s1 + $0x13c] sm:$0xf]
  %v182 = vld [vmem:[%s1 + $0x140] sm:$0xf]
  %v183 = vld [vmem:[%s1 + $0x144] sm:$0xf]
  %v184 = vld [vmem:[%s1 + $0x148] sm:$0xf]
  %v185 = vld [vmem:[%s1 + $0x14c] sm:$0xf]
  %v186 = vld [vmem:[%s1 + $0x150] sm:$0xf]
  %v187 = vld [vmem:[%s1 + $0x154] sm:$0xf]
  %v188 = vld [vmem:[%s1 + $0x158] sm:$0xf]
  %v189 = vld [vmem:[%s1 + $0x15c] sm:$0xf]
  %v190 = vld [vmem:[%s1 + $0x160] sm:$0xf]
  %v191 = vld [vmem:[%s1 + $0x164] sm:$0xf]
  %v192 = vld [vmem:[%s1 + $0x168] sm:$0xf]
  %v193 = vld [vmem:[%s1 + $0x16c] sm:$0xf]
  %v194 = vld [vmem:[%s1 + $0x170] sm:$0xf]
  %v195 = vld [vmem:[%s1 + $0x174] sm:$0xf]
  %v196 = vld [vmem:[%s1 + $0x178] sm:$0xf]
  %v197 = vld [vmem:[%s1 + $0x17c] sm:$0xf]
  %v198 = vld [vmem:[%s1 + $0x180] sm:$0xf]
  %v199 = vld [vmem:[%s1 + $0x184] sm:$0xf]
  %v200 = vld [vmem:[%s1 + $0x188] sm:$0xf]
  %v201 = vld [vmem:[%s1 + $0x18c] sm:$0xf]
  %v202 = vld [vmem:[%s1 + $0x190] sm:$0xf]
  %v203 = vld [vmem:[%s1 + $0x194] sm:$0xf]
  %v204 = vld [vmem:[%s1 + $0x198] sm:$0xf]
  %v205 = vld [vmem:[%s1 + $0x19c] sm:$0xf]
  %v206 = vld [vmem:[%s1 + $0x1a0] sm:$0xf]
  %v207 = vld [vmem:[%s1 + $0x1a4] sm:$0xf]
  %v208 = vld [vmem:[%s1 + $0x1a8] sm:$0xf]
  %v209 = vld [vmem:[%s1 + $0x1ac] sm:$0xf]
  %v210 = vld [vmem:[%s1 + $0x1b0] sm:$0xf]
  %v211 = vld [vmem:[%s1 + $0x1b4] sm:$0xf]
  %v212 = vld [vmem:[%s1 + $0x1b8] sm:$0xf]
  %v213 = vld [vmem:[%s1 + $0x1bc] sm:$0xf]
  %v214 = vld [vmem:[%s1 + $0x1c0] sm:$0xf]
  %v215 = vld [vmem:[%s1 + $0x1c4] sm:$0xf]
  %v216 = vld [vmem:[%s1 + $0x1c8] sm:$0xf]
  %v217 = vld [vmem:[%s1 + $0x1cc] sm:$0xf]
  %v218 = vld [vmem:[%s1 + $0x1d0] sm:$0xf]
  %v219 = vld [vmem:[%s1 + $0x1d4] sm:$0xf]
  %v220 = vld [vmem:[%s1 + $0x1d8] sm:$0xf]
  %v221 = vld [vmem:[%s1 + $0x1dc] sm:$0xf]
  %v222 = vld [vmem:[%s1 + $0x1e0] sm:$0xf]
  %v223 = vld [vmem:[%s1 + $0x1e4] sm:$0xf]
  %v224 = vld [vmem:[%s1 + $0x1e8] sm:$0xf]
  %v225 = vld [vmem:[%s1 + $0x1ec] sm:$0xf]
  %v226 = vld [vmem:[%s1 + $0x1f0] sm:$0xf]
  %v227 = vld [vmem:[%s1 + $0x1f4] sm:$0xf]
  %v228 = vld [vmem:[%s1 + $0x1f8] sm:$0xf]
  %v229 = vld [vmem:[%s1 + $0x1fc] sm:$0xf]
  %v230 = vld [vmem:[%s1 + $0x200] sm:$0xf]
  %v231 = vld [vmem:[%s1 + $0x204] sm:$0xf]
  %v232 = vld [vmem:[%s1 + $0x208] sm:$0xf]
  %v233 = vld [vmem:[%s1 + $0x20c] sm:$0xf]
  %v234 = vld [vmem:[%s1 + $0x210] sm:$0xf]
  %v235 = vld [vmem:[%s1 + $0x214] sm:$0xf]
  %v236 = vld [vmem:[%s1 + $0x218] sm:$0xf]
  %v237 = vld [vmem:[%s1 + $0x21c] sm:$0xf]
  %v238 = vld [vmem:[%s1 + $0x220] sm:$0xf]
  %v239 = vld [vmem:[%s1 + $0x224] sm:$0xf]
  %v240 = vld [vmem:[%s1 + $0x228] sm:$0xf]
  %v241 = vld [vmem:[%s1 + $0x22c] sm:$0xf]
  %v242 = vld [vmem:[%s1 + $0x230] sm:$0xf]
  %v243 = vld [vmem:[%s1 + $0x234] sm:$0xf]
  %v244 = vld [vmem:[%s1 + $0x238] sm:$0xf]
  %v245 = vld [vmem:[%s1 + $0x23c] sm:$0xf]
  %v246 = vld [vmem:[%s1 + $0x240] sm:$0xf]
  %v247 = vld [vmem:[%s1 + $0x244] sm:$0xf]
  %v248 = vld [vmem:[%s1 + $0x248] sm:$0xf]
  %v249 = vld [vmem:[%s1 + $0x24c] sm:$0xf]
  %v250 = vld [vmem:[%s1 + $0x250] sm:$0xf]
  %v251 = vld [vmem:[%s1 + $0x254] sm:$0xf]
  %v252 = vld [vmem:[%s1 + $0x258] sm:$0xf]
  %v253 = vld [vmem:[%s1 + $0x25c] sm:$0xf]
  %v254 = vld [vmem:[%s1 + $0x260] sm:$0xf]
  %v255 = vld [vmem:[%s1 + $0x264] sm:$0xf]
  %v256 = vld [vmem:[%s1 + $0x268] sm:$0xf]
  %v257 = vld [vmem:[%s1 + $0x26c] sm:$0xf]
  %v258 = vld [vmem:[%s1 + $0x270] sm:$0xf]
  %v259 = vld [vmem:[%s1 + $0x274] sm:$0xf]
  %v260 = vld [vmem:[%s1 + $0x278] sm:$0xf]
  %v261 = vld [vmem:[%s1 + $0x27c] sm:$0xf]
  %v262 = vld [vmem:[%s1 + $0x280] sm:$0xf]
  %v263 = vld [vmem:[%s1 + $0x284] sm:$0xf]
  %v264 = vld [vmem:[%s1 + $0x288] sm:$0xf]
  %v265 = vld [vmem:[%s1 + $0x28c] sm:$0xf]
  %v266 = vld [vmem:[%s1 + $0x290] sm:$0xf]
  %v267 = vld [vmem:[%s1 + $0x294] sm:$0xf]
  %v268 = vld [vmem:[%s1 + $0x298] sm:$0xf]
  %v269 = vld [vmem:[%s1 + $0x29c] sm:$0xf]
  %v270 = vld [vmem:[%s1 + $0x2a0] sm:$0xf]
  %v271 = vld [vmem:[%s1 + $0x2a4] sm:$0xf]
  %v272 = vld [vmem:[%s1 + $0x2a8] sm:$0xf]
  %v273 = vld [vmem:[%s1 + $0x2ac] sm:$0xf]
  %v274 = vld [vmem:[%s1 + $0x2b0] sm:$0xf]
  %v275 = vld [vmem:[%s1 + $0x2b4] sm:$0xf]
  %v276 = vld [vmem:[%s1 + $0x2b8] sm:$0xf]
  %v277 = vld [vmem:[%s1 + $0x2bc] sm:$0xf]
  %v278 = vld [vmem:[%s1 + $0x2c0] sm:$0xf]
  %v279 = vld [vmem:[%s1 + $0x2c4] sm:$0xf]
  %v280 = vld [vmem:[%s1 + $0x2c8] sm:$0xf]
  %v281 = vld [vmem:[%s1 + $0x2cc] sm:$0xf]
  %v282 = vld [vmem:[%s1 + $0x2d0] sm:$0xf]
  %v283 = vld [vmem:[%s1 + $0x2d4] sm:$0xf]
  %v284 = vld [vmem:[%s1 + $0x2d8] sm:$0xf]
  %v285 = vld [vmem:[%s1 + $0x2dc] sm:$0xf]
  %v286 = vld [vmem:[%s1 + $0x2e0] sm:$0xf]
  %v287 = vld [vmem:[%s1 + $0x2e4] sm:$0xf]
  %v288 = vld [vmem:[%s1 + $0x2e8] sm:$0xf]
  %v289 = vld [vmem:[%s1 + $0x2ec] sm:$0xf]
  %v290 = vld [vmem:[%s1 + $0x2f0] sm:$0xf]
  %v291 = vld [vmem:[%s1 + $0x2f4] sm:$0xf]
  %v292 = vld [vmem:[%s1 + $0x2f8] sm:$0xf]
  %v293 = vld [vmem:[%s1 + $0x2fc] sm:$0xf]
  %v294 = vld [vmem:[%s1 + $0x300] sm:$0xf]
  %v295 = vld [vmem:[%s1 + $0x304] sm:$0xf]
  %v296 = vld [vmem:[%s1 + $0x308] sm:$0xf]
  %v297 = vld [vmem:[%s1 + $0x30c] sm:$0xf]
  %v298 = vld [vmem:[%s1 + $0x310] sm:$0xf]
  %v299 = vld [vmem:[%s1 + $0x314] sm:$0xf]
  %v300 = vld [vmem:[%s1 + $0x318] sm:$0xf]
  %v301 = vld [vmem:[%s1 + $0x31c] sm:$0xf]
  %v302 = vld [vmem:[%s1 + $0x320] sm:$0xf]
  %v303 = vld [vmem:[%s1 + $0x324] sm:$0xf]
  %v304 = vld [vmem:[%s1 + $0x328] sm:$0xf]
  %v305 = vld [vmem:[%s1 + $0x32c] sm:$0xf]
  %v306 = vld [vmem:[%s1 + $0x330] sm:$0xf]
  %v307 = vld [vmem:[%s1 + $0x334] sm:$0xf]
  %v308 = vld [vmem:[%s1 + $0x338] sm:$0xf]
  %v309 = vld [vmem:[%s1 + $0x33c] sm:$0xf]
  %v310 = vld [vmem:[%s1 + $0x340] sm:$0xf]
  %v311 = vld [vmem:[%s1 + $0x344] sm:$0xf]
  %v312 = vld [vmem:[%s1 + $0x348] sm:$0xf]
  %v313 = vld [vmem:[%s1 + $0x34c] sm:$0xf]
  %v314 = vld [vmem:[%s1 + $0x350] sm:$0xf]
  %v315 = vld [vmem:[%s1 + $0x354] sm:$0xf]
  %v316 = vld [vmem:[%s1 + $0x358] sm:$0xf]
  %v317 = vld [vmem:[%s1 + $0x35c] sm:$0xf]
  %v318 = vld [vmem:[%s1 + $0x360] sm:$0xf]
  %v319 = vld [vmem:[%s1 + $0x364] sm:$0xf]
  %v320 = vld [vmem:[%s1 + $0x368] sm:$0xf]
  %v321 = vld [vmem:[%s1 + $0x36c] sm:$0xf]
  %v322 = vld [vmem:[%s1 + $0x370] sm:$0xf]
  %v323 = vld [vmem:[%s1 + $0x374] sm:$0xf]
  %v324 = vld [vmem:[%s1 + $0x378] sm:$0xf]
  %v325 = vld [vmem:[%s1 + $0x37c] sm:$0xf]
  %v326 = vld [vmem:[%s1 + $0x380] sm:$0xf]
  %v327 = vld [vmem:[%s1 + $0x384] sm:$0xf]
  %v328 = vld [vmem:[%s1 + $0x388] sm:$0xf]
  %v329 = vld [vmem:[%s1 + $0x38c] sm:$0xf]
  %v330 = vld [vmem:[%s1 + $0x390] sm:$0xf]
  %v331 = vld [vmem:[%s1 + $0x394] sm:$0xf]
  %v332 = vld [vmem:[%s1 + $0x398] sm:$0xf]
  %v333 = vld [vmem:[%s1 + $0x39c] sm:$0xf]
  %v334 = vld [vmem:[%s1 + $0x3a0] sm:$0xf]
  %v335 = vld [vmem:[%s1 + $0x3a4] sm:$0xf]
  %v336 = vld [vmem:[%s1 + $0x3a8] sm:$0xf]
  %v337 = vld [vmem:[%s1 + $0x3ac] sm:$0xf]
  %v338 = vld [vmem:[%s1 + $0x3b0] sm:$0xf]
  %v339 = vld [vmem:[%s1 + $0x3b4] sm:$0xf]
  %v340 = vld [vmem:[%s1 + $0x3b8] sm:$0xf]
  %v341 = vld [vmem:[%s1 + $0x3bc] sm:$0xf]
  %v342 = vld [vmem:[%s1 + $0x3c0] sm:$0xf]
  %v343 = vld [vmem:[%s1 + $0x3c4] sm:$0xf]
  %v344 = vld [vmem:[%s1 + $0x3c8] sm:$0xf]
  %v345 = vld [vmem:[%s1 + $0x3cc] sm:$0xf]
  %v346 = vld [vmem:[%s1 + $0x3d0] sm:$0xf]
  %v347 = vld [vmem:[%s1 + $0x3d4] sm:$0xf]
  %v348 = vld [vmem:[%s1 + $0x3d8] sm:$0xf]
  %v349 = vld [vmem:[%s1 + $0x3dc] sm:$0xf]
  %v350 = vld [vmem:[%s1 + $0x3e0] sm:$0xf]
  %v351 = vld [vmem:[%s1 + $0x3e4] sm:$0xf]
  %v352 = vld [vmem:[%s1 + $0x3e8] sm:$0xf]
  %v353 = vld [vmem:[%s1 + $0x3ec] sm:$0xf]
  %v354 = vld [vmem:[%s1 + $0x3f0] sm:$0xf]
  %v355 = vld [vmem:[%s1 + $0x3f4] sm:$0xf]
  %v356 = vld [vmem:[%s1 + $0x3f8] sm:$0xf]
  %v357 = vld [vmem:[%s1 + $0x3fc] sm:$0xf]
  %v614 = vunpack.c.l.b16 %v102
  %v615 = vunpack.c.l.b16 %v103
  %v616 = vunpack.c.l.b16 %v104
  %v617 = vunpack.c.l.b16 %v105
  %v618 = vunpack.c.l.b16 %v106
  %v619 = vunpack.c.l.b16 %v107
  %v620 = vunpack.c.l.b16 %v108
  %v621 = vunpack.c.l.b16 %v109
  %v622 = vunpack.c.l.b16 %v110
  %v623 = vunpack.c.l.b16 %v111
  %v624 = vunpack.c.l.b16 %v112
  %v625 = vunpack.c.l.b16 %v113
  %v626 = vunpack.c.l.b16 %v114
  %v627 = vunpack.c.l.b16 %v115
  %v628 = vunpack.c.l.b16 %v116
  %v629 = vunpack.c.l.b16 %v117
  %v630 = vunpack.c.l.b16 %v118
  %v631 = vunpack.c.l.b16 %v119
  %v632 = vunpack.c.l.b16 %v120
  %v633 = vunpack.c.l.b16 %v121
  %v634 = vunpack.c.l.b16 %v122
  %v635 = vunpack.c.l.b16 %v123
  %v636 = vunpack.c.l.b16 %v124
  %v637 = vunpack.c.l.b16 %v125
  %v638 = vunpack.c.l.b16 %v126
  %v639 = vunpack.c.l.b16 %v127
  %v640 = vunpack.c.l.b16 %v128
  %v641 = vunpack.c.l.b16 %v129
  %v642 = vunpack.c.l.b16 %v130
  %v643 = vunpack.c.l.b16 %v131
  %v644 = vunpack.c.l.b16 %v132
  %v645 = vunpack.c.l.b16 %v133
  %v646 = vunpack.c.l.b16 %v134
  %v647 = vunpack.c.l.b16 %v135
  %v648 = vunpack.c.l.b16 %v136
  %v649 = vunpack.c.l.b16 %v137
  %v650 = vunpack.c.l.b16 %v138
  %v651 = vunpack.c.l.b16 %v139
  %v652 = vunpack.c.l.b16 %v140
  %v653 = vunpack.c.l.b16 %v141
  %v654 = vunpack.c.l.b16 %v142
  %v655 = vunpack.c.l.b16 %v143
  %v656 = vunpack.c.l.b16 %v144
  %v657 = vunpack.c.l.b16 %v145
  %v658 = vunpack.c.l.b16 %v146
  %v659 = vunpack.c.l.b16 %v147
  %v660 = vunpack.c.l.b16 %v148
  %v661 = vunpack.c.l.b16 %v149
  %v662 = vunpack.c.l.b16 %v150
  %v663 = vunpack.c.l.b16 %v151
  %v664 = vunpack.c.l.b16 %v152
  %v665 = vunpack.c.l.b16 %v153
  %v666 = vunpack.c.l.b16 %v154
  %v667 = vunpack.c.l.b16 %v155
  %v668 = vunpack.c.l.b16 %v156
  %v669 = vunpack.c.l.b16 %v157
  %v670 = vunpack.c.l.b16 %v158
  %v671 = vunpack.c.l.b16 %v159
  %v672 = vunpack.c.l.b16 %v160
  %v673 = vunpack.c.l.b16 %v161
  %v674 = vunpack.c.l.b16 %v162
  %v675 = vunpack.c.l.b16 %v163
  %v676 = vunpack.c.l.b16 %v164
  %v677 = vunpack.c.l.b16 %v165
  %v678 = vunpack.c.l.b16 %v166
  %v679 = vunpack.c.l.b16 %v167
  %v680 = vunpack.c.l.b16 %v168
  %v681 = vunpack.c.l.b16 %v169
  %v682 = vunpack.c.l.b16 %v170
  %v683 = vunpack.c.l.b16 %v171
  %v684 = vunpack.c.l.b16 %v172
  %v685 = vunpack.c.l.b16 %v173
  %v686 = vunpack.c.l.b16 %v174
  %v687 = vunpack.c.l.b16 %v175
  %v688 = vunpack.c.l.b16 %v176
  %v689 = vunpack.c.l.b16 %v177
  %v690 = vunpack.c.l.b16 %v178
  %v691 = vunpack.c.l.b16 %v179
  %v692 = vunpack.c.l.b16 %v180
  %v693 = vunpack.c.l.b16 %v181
  %v694 = vunpack.c.l.b16 %v182
  %v695 = vunpack.c.l.b16 %v183
  %v696 = vunpack.c.l.b16 %v184
  %v697 = vunpack.c.l.b16 %v185
  %v698 = vunpack.c.l.b16 %v186
  %v699 = vunpack.c.l.b16 %v187
  %v700 = vunpack.c.l.b16 %v188
  %v701 = vunpack.c.l.b16 %v189
  %v702 = vunpack.c.l.b16 %v190
  %v703 = vunpack.c.l.b16 %v191
  %v704 = vunpack.c.l.b16 %v192
  %v705 = vunpack.c.l.b16 %v193
  %v706 = vunpack.c.l.b16 %v194
  %v707 = vunpack.c.l.b16 %v195
  %v708 = vunpack.c.l.b16 %v196
  %v709 = vunpack.c.l.b16 %v197
  %v710 = vunpack.c.l.b16 %v198
  %v711 = vunpack.c.l.b16 %v199
  %v712 = vunpack.c.l.b16 %v200
  %v713 = vunpack.c.l.b16 %v201
  %v714 = vunpack.c.l.b16 %v202
  %v715 = vunpack.c.l.b16 %v203
  %v716 = vunpack.c.l.b16 %v204
  %v717 = vunpack.c.l.b16 %v205
  %v718 = vunpack.c.l.b16 %v206
  %v719 = vunpack.c.l.b16 %v207
  %v720 = vunpack.c.l.b16 %v208
  %v721 = vunpack.c.l.b16 %v209
  %v722 = vunpack.c.l.b16 %v210
  %v723 = vunpack.c.l.b16 %v211
  %v724 = vunpack.c.l.b16 %v212
  %v725 = vunpack.c.l.b16 %v213
  %v726 = vunpack.c.l.b16 %v214
  %v727 = vunpack.c.l.b16 %v215
  %v728 = vunpack.c.l.b16 %v216
  %v729 = vunpack.c.l.b16 %v217
  %v730 = vunpack.c.l.b16 %v218
  %v731 = vunpack.c.l.b16 %v219
  %v732 = vunpack.c.l.b16 %v220
  %v733 = vunpack.c.l.b16 %v221
  %v734 = vunpack.c.l.b16 %v222
  %v735 = vunpack.c.l.b16 %v223
  %v736 = vunpack.c.l.b16 %v224
  %v737 = vunpack.c.l.b16 %v225
  %v738 = vunpack.c.l.b16 %v226
  %v739 = vunpack.c.l.b16 %v227
  %v740 = vunpack.c.l.b16 %v228
  %v741 = vunpack.c.l.b16 %v229
  %v742 = vunpack.c.l.b16 %v230
  %v743 = vunpack.c.l.b16 %v231
  %v744 = vunpack.c.l.b16 %v232
  %v745 = vunpack.c.l.b16 %v233
  %v746 = vunpack.c.l.b16 %v234
  %v747 = vunpack.c.l.b16 %v235
  %v748 = vunpack.c.l.b16 %v236
  %v749 = vunpack.c.l.b16 %v237
  %v750 = vunpack.c.l.b16 %v238
  %v751 = vunpack.c.l.b16 %v239
  %v752 = vunpack.c.l.b16 %v240
  %v753 = vunpack.c.l.b16 %v241
  %v754 = vunpack.c.l.b16 %v242
  %v755 = vunpack.c.l.b16 %v243
  %v756 = vunpack.c.l.b16 %v244
  %v757 = vunpack.c.l.b16 %v245
  %v758 = vunpack.c.l.b16 %v246
  %v759 = vunpack.c.l.b16 %v247
  %v760 = vunpack.c.l.b16 %v248
  %v761 = vunpack.c.l.b16 %v249
  %v762 = vunpack.c.l.b16 %v250
  %v763 = vunpack.c.l.b16 %v251
  %v764 = vunpack.c.l.b16 %v252
  %v765 = vunpack.c.l.b16 %v253
  %v766 = vunpack.c.l.b16 %v254
  %v767 = vunpack.c.l.b16 %v255
  %v768 = vunpack.c.l.b16 %v256
  %v769 = vunpack.c.l.b16 %v257
  %v770 = vunpack.c.l.b16 %v258
  %v771 = vunpack.c.l.b16 %v259
  %v772 = vunpack.c.l.b16 %v260
  %v773 = vunpack.c.l.b16 %v261
  %v774 = vunpack.c.l.b16 %v262
  %v775 = vunpack.c.l.b16 %v263
  %v776 = vunpack.c.l.b16 %v264
  %v777 = vunpack.c.l.b16 %v265
  %v778 = vunpack.c.l.b16 %v266
  %v779 = vunpack.c.l.b16 %v267
  %v780 = vunpack.c.l.b16 %v268
  %v781 = vunpack.c.l.b16 %v269
  %v782 = vunpack.c.l.b16 %v270
  %v783 = vunpack.c.l.b16 %v271
  %v784 = vunpack.c.l.b16 %v272
  %v785 = vunpack.c.l.b16 %v273
  %v786 = vunpack.c.l.b16 %v274
  %v787 = vunpack.c.l.b16 %v275
  %v788 = vunpack.c.l.b16 %v276
  %v789 = vunpack.c.l.b16 %v277
  %v790 = vunpack.c.l.b16 %v278
  %v791 = vunpack.c.l.b16 %v279
  %v792 = vunpack.c.l.b16 %v280
  %v793 = vunpack.c.l.b16 %v281
  %v794 = vunpack.c.l.b16 %v282
  %v795 = vunpack.c.l.b16 %v283
  %v796 = vunpack.c.l.b16 %v284
  %v797 = vunpack.c.l.b16 %v285
  %v798 = vunpack.c.l.b16 %v286
  %v799 = vunpack.c.l.b16 %v287
  %v800 = vunpack.c.l.b16 %v288
  %v801 = vunpack.c.l.b16 %v289
  %v802 = vunpack.c.l.b16 %v290
  %v803 = vunpack.c.l.b16 %v291
  %v804 = vunpack.c.l.b16 %v292
  %v805 = vunpack.c.l.b16 %v293
  %v806 = vunpack.c.l.b16 %v294
  %v807 = vunpack.c.l.b16 %v295
  %v808 = vunpack.c.l.b16 %v296
  %v809 = vunpack.c.l.b16 %v297
  %v810 = vunpack.c.l.b16 %v298
  %v811 = vunpack.c.l.b16 %v299
  %v812 = vunpack.c.l.b16 %v300
  %v813 = vunpack.c.l.b16 %v301
  %v814 = vunpack.c.l.b16 %v302
  %v815 = vunpack.c.l.b16 %v303
  %v816 = vunpack.c.l.b16 %v304
  %v817 = vunpack.c.l.b16 %v305
  %v818 = vunpack.c.l.b16 %v306
  %v819 = vunpack.c.l.b16 %v307
  %v820 = vunpack.c.l.b16 %v308
  %v821 = vunpack.c.l.b16 %v309
  %v822 = vunpack.c.l.b16 %v310
  %v823 = vunpack.c.l.b16 %v311
  %v824 = vunpack.c.l.b16 %v312
  %v825 = vunpack.c.l.b16 %v313
  %v826 = vunpack.c.l.b16 %v314
  %v827 = vunpack.c.l.b16 %v315
  %v828 = vunpack.c.l.b16 %v316
  %v829 = vunpack.c.l.b16 %v317
  %v830 = vunpack.c.l.b16 %v318
  %v831 = vunpack.c.l.b16 %v319
  %v832 = vunpack.c.l.b16 %v320
  %v833 = vunpack.c.l.b16 %v321
  %v834 = vunpack.c.l.b16 %v322
  %v835 = vunpack.c.l.b16 %v323
  %v836 = vunpack.c.l.b16 %v324
  %v837 = vunpack.c.l.b16 %v325
  %v838 = vunpack.c.l.b16 %v326
  %v839 = vunpack.c.l.b16 %v327
  %v840 = vunpack.c.l.b16 %v328
  %v841 = vunpack.c.l.b16 %v329
  %v842 = vunpack.c.l.b16 %v330
  %v843 = vunpack.c.l.b16 %v331
  %v844 = vunpack.c.l.b16 %v332
  %v845 = vunpack.c.l.b16 %v333
  %v846 = vunpack.c.l.b16 %v334
  %v847 = vunpack.c.l.b16 %v335
  %v848 = vunpack.c.l.b16 %v336
  %v849 = vunpack.c.l.b16 %v337
  %v850 = vunpack.c.l.b16 %v338
  %v851 = vunpack.c.l.b16 %v339
  %v852 = vunpack.c.l.b16 %v340
  %v853 = vunpack.c.l.b16 %v341
  %v854 = vunpack.c.l.b16 %v342
  %v855 = vunpack.c.l.b16 %v343
  %v856 = vunpack.c.l.b16 %v344
  %v857 = vunpack.c.l.b16 %v345
  %v858 = vunpack.c.l.b16 %v346
  %v859 = vunpack.c.l.b16 %v347
  %v860 = vunpack.c.l.b16 %v348
  %v861 = vunpack.c.l.b16 %v349
  %v862 = vunpack.c.l.b16 %v350
  %v863 = vunpack.c.l.b16 %v351
  %v864 = vunpack.c.l.b16 %v352
  %v865 = vunpack.c.l.b16 %v353
  %v866 = vunpack.c.l.b16 %v354
  %v867 = vunpack.c.l.b16 %v355
  %v868 = vunpack.c.l.b16 %v356
  %v869 = vunpack.c.l.b16 %v357
  %v870 = vpack.c.b16 %v615, %v614
  %v871 = vpack.c.b16 %v617, %v616
  %v872 = vpack.c.b16 %v619, %v618
  %v873 = vpack.c.b16 %v621, %v620
  %v874 = vpack.c.b16 %v623, %v622
  %v875 = vpack.c.b16 %v625, %v624
  %v876 = vpack.c.b16 %v627, %v626
  %v877 = vpack.c.b16 %v629, %v628
  %v878 = vpack.c.b16 %v631, %v630
  %v879 = vpack.c.b16 %v633, %v632
  %v880 = vpack.c.b16 %v635, %v634
  %v881 = vpack.c.b16 %v637, %v636
  %v882 = vpack.c.b16 %v639, %v638
  %v883 = vpack.c.b16 %v641, %v640
  %v884 = vpack.c.b16 %v643, %v642
  %v885 = vpack.c.b16 %v645, %v644
  %v886 = vpack.c.b16 %v647, %v646
  %v887 = vpack.c.b16 %v649, %v648
  %v888 = vpack.c.b16 %v651, %v650
  %v889 = vpack.c.b16 %v653, %v652
  %v890 = vpack.c.b16 %v655, %v654
  %v891 = vpack.c.b16 %v657, %v656
  %v892 = vpack.c.b16 %v659, %v658
  %v893 = vpack.c.b16 %v661, %v660
  %v894 = vpack.c.b16 %v663, %v662
  %v895 = vpack.c.b16 %v665, %v664
  %v896 = vpack.c.b16 %v667, %v666
  %v897 = vpack.c.b16 %v669, %v668
  %v898 = vpack.c.b16 %v671, %v670
  %v899 = vpack.c.b16 %v673, %v672
  %v900 = vpack.c.b16 %v675, %v674
  %v901 = vpack.c.b16 %v677, %v676
  %v902 = vpack.c.b16 %v679, %v678
  %v903 = vpack.c.b16 %v681, %v680
  %v904 = vpack.c.b16 %v683, %v682
  %v905 = vpack.c.b16 %v685, %v684
  %v906 = vpack.c.b16 %v687, %v686
  %v907 = vpack.c.b16 %v689, %v688
  %v908 = vpack.c.b16 %v691, %v690
  %v909 = vpack.c.b16 %v693, %v692
  %v910 = vpack.c.b16 %v695, %v694
  %v911 = vpack.c.b16 %v697, %v696
  %v912 = vpack.c.b16 %v699, %v698
  %v913 = vpack.c.b16 %v701, %v700
  %v914 = vpack.c.b16 %v703, %v702
  %v915 = vpack.c.b16 %v705, %v704
  %v916 = vpack.c.b16 %v707, %v706
  %v917 = vpack.c.b16 %v709, %v708
  %v918 = vpack.c.b16 %v711, %v710
  %v919 = vpack.c.b16 %v713, %v712
  %v920 = vpack.c.b16 %v715, %v714
  %v921 = vpack.c.b16 %v717, %v716
  %v922 = vpack.c.b16 %v719, %v718
  %v923 = vpack.c.b16 %v721, %v720
  %v924 = vpack.c.b16 %v723, %v722
  %v925 = vpack.c.b16 %v725, %v724
  %v926 = vpack.c.b16 %v727, %v726
  %v927 = vpack.c.b16 %v729, %v728
  %v928 = vpack.c.b16 %v731, %v730
  %v929 = vpack.c.b16 %v733, %v732
  %v930 = vpack.c.b16 %v735, %v734
  %v931 = vpack.c.b16 %v737, %v736
  %v932 = vpack.c.b16 %v739, %v738
  %v933 = vpack.c.b16 %v741, %v740
  %v934 = vpack.c.b16 %v743, %v742
  %v935 = vpack.c.b16 %v745, %v744
  %v936 = vpack.c.b16 %v747, %v746
  %v937 = vpack.c.b16 %v749, %v748
  %v938 = vpack.c.b16 %v751, %v750
  %v939 = vpack.c.b16 %v753, %v752
  %v940 = vpack.c.b16 %v755, %v754
  %v941 = vpack.c.b16 %v757, %v756
  %v942 = vpack.c.b16 %v759, %v758
  %v943 = vpack.c.b16 %v761, %v760
  %v944 = vpack.c.b16 %v763, %v762
  %v945 = vpack.c.b16 %v765, %v764
  %v946 = vpack.c.b16 %v767, %v766
  %v947 = vpack.c.b16 %v769, %v768
  %v948 = vpack.c.b16 %v771, %v770
  %v949 = vpack.c.b16 %v773, %v772
  %v950 = vpack.c.b16 %v775, %v774
  %v951 = vpack.c.b16 %v777, %v776
  %v952 = vpack.c.b16 %v779, %v778
  %v953 = vpack.c.b16 %v781, %v780
  %v954 = vpack.c.b16 %v783, %v782
  %v955 = vpack.c.b16 %v785, %v784
  %v956 = vpack.c.b16 %v787, %v786
  %v957 = vpack.c.b16 %v789, %v788
  %v958 = vpack.c.b16 %v791, %v790
  %v959 = vpack.c.b16 %v793, %v792
  %v960 = vpack.c.b16 %v795, %v794
  %v961 = vpack.c.b16 %v797, %v796
  %v962 = vpack.c.b16 %v799, %v798
  %v963 = vpack.c.b16 %v801, %v800
  %v964 = vpack.c.b16 %v803, %v802
  %v965 = vpack.c.b16 %v805, %v804
  %v966 = vpack.c.b16 %v807, %v806
  %v967 = vpack.c.b16 %v809, %v808
  %v968 = vpack.c.b16 %v811, %v810
  %v969 = vpack.c.b16 %v813, %v812
  %v970 = vpack.c.b16 %v815, %v814
  %v971 = vpack.c.b16 %v817, %v816
  %v972 = vpack.c.b16 %v819, %v818
  %v973 = vpack.c.b16 %v821, %v820
  %v974 = vpack.c.b16 %v823, %v822
  %v975 = vpack.c.b16 %v825, %v824
  %v976 = vpack.c.b16 %v827, %v826
  %v977 = vpack.c.b16 %v829, %v828
  %v978 = vpack.c.b16 %v831, %v830
  %v979 = vpack.c.b16 %v833, %v832
  %v980 = vpack.c.b16 %v835, %v834
  %v981 = vpack.c.b16 %v837, %v836
  %v982 = vpack.c.b16 %v839, %v838
  %v983 = vpack.c.b16 %v841, %v840
  %v984 = vpack.c.b16 %v843, %v842
  %v985 = vpack.c.b16 %v845, %v844
  %v986 = vpack.c.b16 %v847, %v846
  %v987 = vpack.c.b16 %v849, %v848
  %v988 = vpack.c.b16 %v851, %v850
  %v989 = vpack.c.b16 %v853, %v852
  %v990 = vpack.c.b16 %v855, %v854
  %v991 = vpack.c.b16 %v857, %v856
  %v992 = vpack.c.b16 %v859, %v858
  %v993 = vpack.c.b16 %v861, %v860
  %v994 = vpack.c.b16 %v863, %v862
  %v995 = vpack.c.b16 %v865, %v864
  %v996 = vpack.c.b16 %v867, %v866
  %v997 = vpack.c.b16 %v869, %v868
  %1126 = vmatprep.subr.bf16.mxu0 0
  %1127 = vmatpush1.bf16.msra.mxu0 %v870
  %1128 = vmatprep.subr.bf16.mxu0 0
  %1129 = vmatpush1.bf16.msra.mxu0 %v871
  %1130 = vmatprep.subr.bf16.mxu0 0
  %1131 = vmatpush1.bf16.msra.mxu0 %v872
  %1132 = vmatprep.subr.bf16.mxu0 0
  %1133 = vmatpush1.bf16.msra.mxu0 %v873
  %1134 = vmatprep.subr.bf16.mxu0 0
  %1135 = vmatpush1.bf16.msra.mxu0 %v874
  %1136 = vmatprep.subr.bf16.mxu0 0
  %1137 = vmatpush1.bf16.msra.mxu0 %v875
  %1138 = vmatprep.subr.bf16.mxu0 0
  %1139 = vmatpush1.bf16.msra.mxu0 %v876
  %1140 = vmatprep.subr.bf16.mxu0 0
  %1141 = vmatpush1.bf16.msra.mxu0 %v877
  %1142 = vmatprep.subr.bf16.mxu0 0
  %1143 = vmatpush1.bf16.msra.mxu0 %v878
  %1144 = vmatprep.subr.bf16.mxu0 0
  %1145 = vmatpush1.bf16.msra.mxu0 %v879
  %1146 = vmatprep.subr.bf16.mxu0 0
  %1147 = vmatpush1.bf16.msra.mxu0 %v880
  %1148 = vmatprep.subr.bf16.mxu0 0
  %1149 = vmatpush1.bf16.msra.mxu0 %v881
  %1150 = vmatprep.subr.bf16.mxu0 0
  %1151 = vmatpush1.bf16.msra.mxu0 %v882
  %1152 = vmatprep.subr.bf16.mxu0 0
  %1153 = vmatpush1.bf16.msra.mxu0 %v883
  %1154 = vmatprep.subr.bf16.mxu0 0
  %1155 = vmatpush1.bf16.msra.mxu0 %v884
  %1156 = vmatprep.subr.bf16.mxu0 0
  %1157 = vmatpush1.bf16.msra.mxu0 %v885
  %1158 = vmatprep.mubr.bf16.mxu0 %v87
  %1159 = vmatmul.mubr.bf16.gmra.mrb[0].mxu0 %v86
  %v1160 = vpop.f32.mrb[0].mxu0
  %v1161 = vadd.f32 0.0, %v1160
  %v1162 = vpop.f32.mrb[0].mxu0
  %v1163 = vpop.f32.mrb[0].mxu0
  %v1164 = vpop.f32.mrb[0].mxu0
  %1165 = vdwg.mxu0
  %1166 = vmatprep.subr.bf16.mxu0 0
  %1167 = vmatpush1.bf16.msra.mxu0 %v886
  %1168 = vmatprep.subr.bf16.mxu0 0
  %1169 = vmatpush1.bf16.msra.mxu0 %v887
  %1170 = vmatprep.subr.bf16.mxu0 0
  %1171 = vmatpush1.bf16.msra.mxu0 %v888
  %1172 = vmatprep.subr.bf16.mxu0 0
  %1173 = vmatpush1.bf16.msra.mxu0 %v889
  %1174 = vmatprep.subr.bf16.mxu0 0
  %1175 = vmatpush1.bf16.msra.mxu0 %v890
  %1176 = vmatprep.subr.bf16.mxu0 0
  %1177 = vmatpush1.bf16.msra.mxu0 %v891
  %1178 = vmatprep.subr.bf16.mxu0 0
  %1179 = vmatpush1.bf16.msra.mxu0 %v892
  %1180 = vmatprep.subr.bf16.mxu0 0
  %1181 = vmatpush1.bf16.msra.mxu0 %v893
  %1182 = vmatprep.subr.bf16.mxu0 0
  %1183 = vmatpush1.bf16.msra.mxu0 %v894
  %1184 = vmatprep.subr.bf16.mxu0 0
  %1185 = vmatpush1.bf16.msra.mxu0 %v895
  %1186 = vmatprep.subr.bf16.mxu0 0
  %1187 = vmatpush1.bf16.msra.mxu0 %v896
  %1188 = vmatprep.subr.bf16.mxu0 0
  %1189 = vmatpush1.bf16.msra.mxu0 %v897
  %1190 = vmatprep.subr.bf16.mxu0 0
  %1191 = vmatpush1.bf16.msra.mxu0 %v898
  %1192 = vmatprep.subr.bf16.mxu0 0
  %1193 = vmatpush1.bf16.msra.mxu0 %v899
  %1194 = vmatprep.subr.bf16.mxu0 0
  %1195 = vmatpush1.bf16.msra.mxu0 %v900
  %1196 = vmatprep.subr.bf16.mxu0 0
  %1197 = vmatpush1.bf16.msra.mxu0 %v901
  %1198 = vmatprep.mubr.bf16.mxu0 %v89
  %1199 = vmatmul.mubr.bf16.gmra.mrb[0].mxu0 %v88
  %v1200 = vpop.f32.mrb[0].mxu0
  %v1201 = vadd.f32 %v1161, %v1200
  %v1202 = vpop.f32.mrb[0].mxu0
  %v1203 = vpop.f32.mrb[0].mxu0
  %v1204 = vpop.f32.mrb[0].mxu0
  %1205 = vdwg.mxu0
  %1206 = vmatprep.subr.bf16.mxu0 0
  %1207 = vmatpush1.bf16.msra.mxu0 %v902
  %1208 = vmatprep.subr.bf16.mxu0 0
  %1209 = vmatpush1.bf16.msra.mxu0 %v903
  %1210 = vmatprep.subr.bf16.mxu0 0
  %1211 = vmatpush1.bf16.msra.mxu0 %v904
  %1212 = vmatprep.subr.bf16.mxu0 0
  %1213 = vmatpush1.bf16.msra.mxu0 %v905
  %1214 = vmatprep.subr.bf16.mxu0 0
  %1215 = vmatpush1.bf16.msra.mxu0 %v906
  %1216 = vmatprep.subr.bf16.mxu0 0
  %1217 = vmatpush1.bf16.msra.mxu0 %v907
  %1218 = vmatprep.subr.bf16.mxu0 0
  %1219 = vmatpush1.bf16.msra.mxu0 %v908
  %1220 = vmatprep.subr.bf16.mxu0 0
  %1221 = vmatpush1.bf16.msra.mxu0 %v909
  %1222 = vmatprep.subr.bf16.mxu0 0
  %1223 = vmatpush1.bf16.msra.mxu0 %v910
  %1224 = vmatprep.subr.bf16.mxu0 0
  %1225 = vmatpush1.bf16.msra.mxu0 %v911
  %1226 = vmatprep.subr.bf16.mxu0 0
  %1227 = vmatpush1.bf16.msra.mxu0 %v912
  %1228 = vmatprep.subr.bf16.mxu0 0
  %1229 = vmatpush1.bf16.msra.mxu0 %v913
  %1230 = vmatprep.subr.bf16.mxu0 0
  %1231 = vmatpush1.bf16.msra.mxu0 %v914
  %1232 = vmatprep.subr.bf16.mxu0 0
  %1233 = vmatpush1.bf16.msra.mxu0 %v915
  %1234 = vmatprep.subr.bf16.mxu0 0
  %1235 = vmatpush1.bf16.msra.mxu0 %v916
  %1236 = vmatprep.subr.bf16.mxu0 0
  %1237 = vmatpush1.bf16.msra.mxu0 %v917
  %1238 = vmatprep.mubr.bf16.mxu0 %v91
  %1239 = vmatmul.mubr.bf16.gmra.mrb[0].mxu0 %v90
  %v1240 = vpop.f32.mrb[0].mxu0
  %v1241 = vadd.f32 %v1201, %v1240
  %v1242 = vpop.f32.mrb[0].mxu0
  %v1243 = vpop.f32.mrb[0].mxu0
  %v1244 = vpop.f32.mrb[0].mxu0
  %1245 = vdwg.mxu0
  %1246 = vmatprep.subr.bf16.mxu0 0
  %1247 = vmatpush1.bf16.msra.mxu0 %v918
  %1248 = vmatprep.subr.bf16.mxu0 0
  %1249 = vmatpush1.bf16.msra.mxu0 %v919
  %1250 = vmatprep.subr.bf16.mxu0 0
  %1251 = vmatpush1.bf16.msra.mxu0 %v920
  %1252 = vmatprep.subr.bf16.mxu0 0
  %1253 = vmatpush1.bf16.msra.mxu0 %v921
  %1254 = vmatprep.subr.bf16.mxu0 0
  %1255 = vmatpush1.bf16.msra.mxu0 %v922
  %1256 = vmatprep.subr.bf16.mxu0 0
  %1257 = vmatpush1.bf16.msra.mxu0 %v923
  %1258 = vmatprep.subr.bf16.mxu0 0
  %1259 = vmatpush1.bf16.msra.mxu0 %v924
  %1260 = vmatprep.subr.bf16.mxu0 0
  %1261 = vmatpush1.bf16.msra.mxu0 %v925
  %1262 = vmatprep.subr.bf16.mxu0 0
  %1263 = vmatpush1.bf16.msra.mxu0 %v926
  %1264 = vmatprep.subr.bf16.mxu0 0
  %1265 = vmatpush1.bf16.msra.mxu0 %v927
  %1266 = vmatprep.subr.bf16.mxu0 0
  %1267 = vmatpush1.bf16.msra.mxu0 %v928
  %1268 = vmatprep.subr.bf16.mxu0 0
  %1269 = vmatpush1.bf16.msra.mxu0 %v929
  %1270 = vmatprep.subr.bf16.mxu0 0
  %1271 = vmatpush1.bf16.msra.mxu0 %v930
  %1272 = vmatprep.subr.bf16.mxu0 0
  %1273 = vmatpush1.bf16.msra.mxu0 %v931
  %1274 = vmatprep.subr.bf16.mxu0 0
  %1275 = vmatpush1.bf16.msra.mxu0 %v932
  %1276 = vmatprep.subr.bf16.mxu0 0
  %1277 = vmatpush1.bf16.msra.mxu0 %v933
  %1278 = vmatprep.mubr.bf16.mxu0 %v93
  %1279 = vmatmul.mubr.bf16.gmra.mrb[0].mxu0 %v92
  %v1280 = vpop.f32.mrb[0].mxu0
  %v1281 = vadd.f32 %v1241, %v1280
  %v1282 = vpop.f32.mrb[0].mxu0
  %v1283 = vpop.f32.mrb[0].mxu0
  %v1284 = vpop.f32.mrb[0].mxu0
  %1285 = vdwg.mxu0
  %1286 = vmatprep.subr.bf16.mxu0 0
  %1287 = vmatpush1.bf16.msra.mxu0 %v934
  %1288 = vmatprep.subr.bf16.mxu0 0
  %1289 = vmatpush1.bf16.msra.mxu0 %v935
  %1290 = vmatprep.subr.bf16.mxu0 0
  %1291 = vmatpush1.bf16.msra.mxu0 %v936
  %1292 = vmatprep.subr.bf16.mxu0 0
  %1293 = vmatpush1.bf16.msra.mxu0 %v937
  %1294 = vmatprep.subr.bf16.mxu0 0
  %1295 = vmatpush1.bf16.msra.mxu0 %v938
  %1296 = vmatprep.subr.bf16.mxu0 0
  %1297 = vmatpush1.bf16.msra.mxu0 %v939
  %1298 = vmatprep.subr.bf16.mxu0 0
  %1299 = vmatpush1.bf16.msra.mxu0 %v940
  %1300 = vmatprep.subr.bf16.mxu0 0
  %1301 = vmatpush1.bf16.msra.mxu0 %v941
  %1302 = vmatprep.subr.bf16.mxu0 0
  %1303 = vmatpush1.bf16.msra.mxu0 %v942
  %1304 = vmatprep.subr.bf16.mxu0 0
  %1305 = vmatpush1.bf16.msra.mxu0 %v943
  %1306 = vmatprep.subr.bf16.mxu0 0
  %1307 = vmatpush1.bf16.msra.mxu0 %v944
  %1308 = vmatprep.subr.bf16.mxu0 0
  %1309 = vmatpush1.bf16.msra.mxu0 %v945
  %1310 = vmatprep.subr.bf16.mxu0 0
  %1311 = vmatpush1.bf16.msra.mxu0 %v946
  %1312 = vmatprep.subr.bf16.mxu0 0
  %1313 = vmatpush1.bf16.msra.mxu0 %v947
  %1314 = vmatprep.subr.bf16.mxu0 0
  %1315 = vmatpush1.bf16.msra.mxu0 %v948
  %1316 = vmatprep.subr.bf16.mxu0 0
  %1317 = vmatpush1.bf16.msra.mxu0 %v949
  %1318 = vmatprep.mubr.bf16.mxu0 %v95
  %1319 = vmatmul.mubr.bf16.gmra.mrb[0].mxu0 %v94
  %v1320 = vpop.f32.mrb[0].mxu0
  %v1321 = vadd.f32 %v1281, %v1320
  %v1322 = vpop.f32.mrb[0].mxu0
  %v1323 = vpop.f32.mrb[0].mxu0
  %v1324 = vpop.f32.mrb[0].mxu0
  %1325 = vdwg.mxu0
  %1326 = vmatprep.subr.bf16.mxu0 0
  %1327 = vmatpush1.bf16.msra.mxu0 %v950
  %1328 = vmatprep.subr.bf16.mxu0 0
  %1329 = vmatpush1.bf16.msra.mxu0 %v951
  %1330 = vmatprep.subr.bf16.mxu0 0
  %1331 = vmatpush1.bf16.msra.mxu0 %v952
  %1332 = vmatprep.subr.bf16.mxu0 0
  %1333 = vmatpush1.bf16.msra.mxu0 %v953
  %1334 = vmatprep.subr.bf16.mxu0 0
  %1335 = vmatpush1.bf16.msra.mxu0 %v954
  %1336 = vmatprep.subr.bf16.mxu0 0
  %1337 = vmatpush1.bf16.msra.mxu0 %v955
  %1338 = vmatprep.subr.bf16.mxu0 0
  %1339 = vmatpush1.bf16.msra.mxu0 %v956
  %1340 = vmatprep.subr.bf16.mxu0 0
  %1341 = vmatpush1.bf16.msra.mxu0 %v957
  %1342 = vmatprep.subr.bf16.mxu0 0
  %1343 = vmatpush1.bf16.msra.mxu0 %v958
  %1344 = vmatprep.subr.bf16.mxu0 0
  %1345 = vmatpush1.bf16.msra.mxu0 %v959
  %1346 = vmatprep.subr.bf16.mxu0 0
  %1347 = vmatpush1.bf16.msra.mxu0 %v960
  %1348 = vmatprep.subr.bf16.mxu0 0
  %1349 = vmatpush1.bf16.msra.mxu0 %v961
  %1350 = vmatprep.subr.bf16.mxu0 0
  %1351 = vmatpush1.bf16.msra.mxu0 %v962
  %1352 = vmatprep.subr.bf16.mxu0 0
  %1353 = vmatpush1.bf16.msra.mxu0 %v963
  %1354 = vmatprep.subr.bf16.mxu0 0
  %1355 = vmatpush1.bf16.msra.mxu0 %v964
  %1356 = vmatprep.subr.bf16.mxu0 0
  %1357 = vmatpush1.bf16.msra.mxu0 %v965
  %1358 = vmatprep.mubr.bf16.mxu0 %v97
  %1359 = vmatmul.mubr.bf16.gmra.mrb[0].mxu0 %v96
  %v1360 = vpop.f32.mrb[0].mxu0
  %v1361 = vadd.f32 %v1321, %v1360
  %v1362 = vpop.f32.mrb[0].mxu0
  %v1363 = vpop.f32.mrb[0].mxu0
  %v1364 = vpop.f32.mrb[0].mxu0
  %1365 = vdwg.mxu0
  %1366 = vmatprep.subr.bf16.mxu0 0
  %1367 = vmatpush1.bf16.msra.mxu0 %v966
  %1368 = vmatprep.subr.bf16.mxu0 0
  %1369 = vmatpush1.bf16.msra.mxu0 %v967
  %1370 = vmatprep.subr.bf16.mxu0 0
  %1371 = vmatpush1.bf16.msra.mxu0 %v968
  %1372 = vmatprep.subr.bf16.mxu0 0
  %1373 = vmatpush1.bf16.msra.mxu0 %v969
  %1374 = vmatprep.subr.bf16.mxu0 0
  %1375 = vmatpush1.bf16.msra.mxu0 %v970
  %1376 = vmatprep.subr.bf16.mxu0 0
  %1377 = vmatpush1.bf16.msra.mxu0 %v971
  %1378 = vmatprep.subr.bf16.mxu0 0
  %1379 = vmatpush1.bf16.msra.mxu0 %v972
  %1380 = vmatprep.subr.bf16.mxu0 0
  %1381 = vmatpush1.bf16.msra.mxu0 %v973
  %1382 = vmatprep.subr.bf16.mxu0 0
  %1383 = vmatpush1.bf16.msra.mxu0 %v974
  %1384 = vmatprep.subr.bf16.mxu0 0
  %1385 = vmatpush1.bf16.msra.mxu0 %v975
  %1386 = vmatprep.subr.bf16.mxu0 0
  %1387 = vmatpush1.bf16.msra.mxu0 %v976
  %1388 = vmatprep.subr.bf16.mxu0 0
  %1389 = vmatpush1.bf16.msra.mxu0 %v977
  %1390 = vmatprep.subr.bf16.mxu0 0
  %1391 = vmatpush1.bf16.msra.mxu0 %v978
  %1392 = vmatprep.subr.bf16.mxu0 0
  %1393 = vmatpush1.bf16.msra.mxu0 %v979
  %1394 = vmatprep.subr.bf16.mxu0 0
  %1395 = vmatpush1.bf16.msra.mxu0 %v980
  %1396 = vmatprep.subr.bf16.mxu0 0
  %1397 = vmatpush1.bf16.msra.mxu0 %v981
  %1398 = vmatprep.mubr.bf16.mxu0 %v99
  %1399 = vmatmul.mubr.bf16.gmra.mrb[0].mxu0 %v98
  %v1400 = vpop.f32.mrb[0].mxu0
  %v1401 = vadd.f32 %v1361, %v1400
  %v1402 = vpop.f32.mrb[0].mxu0
  %v1403 = vpop.f32.mrb[0].mxu0
  %v1404 = vpop.f32.mrb[0].mxu0
  %1405 = vdwg.mxu0
  %1406 = vmatprep.subr.bf16.mxu0 0
  %1407 = vmatpush1.bf16.msra.mxu0 %v982
  %1408 = vmatprep.subr.bf16.mxu0 0
  %1409 = vmatpush1.bf16.msra.mxu0 %v983
  %1410 = vmatprep.subr.bf16.mxu0 0
  %1411 = vmatpush1.bf16.msra.mxu0 %v984
  %1412 = vmatprep.subr.bf16.mxu0 0
  %1413 = vmatpush1.bf16.msra.mxu0 %v985
  %1414 = vmatprep.subr.bf16.mxu0 0
  %1415 = vmatpush1.bf16.msra.mxu0 %v986
  %1416 = vmatprep.subr.bf16.mxu0 0
  %1417 = vmatpush1.bf16.msra.mxu0 %v987
  %1418 = vmatprep.subr.bf16.mxu0 0
  %1419 = vmatpush1.bf16.msra.mxu0 %v988
  %1420 = vmatprep.subr.bf16.mxu0 0
  %1421 = vmatpush1.bf16.msra.mxu0 %v989
  %1422 = vmatprep.subr.bf16.mxu0 0
  %1423 = vmatpush1.bf16.msra.mxu0 %v990
  %1424 = vmatprep.subr.bf16.mxu0 0
  %1425 = vmatpush1.bf16.msra.mxu0 %v991
  %1426 = vmatprep.subr.bf16.mxu0 0
  %1427 = vmatpush1.bf16.msra.mxu0 %v992
  %1428 = vmatprep.subr.bf16.mxu0 0
  %1429 = vmatpush1.bf16.msra.mxu0 %v993
  %1430 = vmatprep.subr.bf16.mxu0 0
  %1431 = vmatpush1.bf16.msra.mxu0 %v994
  %1432 = vmatprep.subr.bf16.mxu0 0
  %1433 = vmatpush1.bf16.msra.mxu0 %v995
  %1434 = vmatprep.subr.bf16.mxu0 0
  %1435 = vmatpush1.bf16.msra.mxu0 %v996
  %1436 = vmatprep.subr.bf16.mxu0 0
  %1437 = vmatpush1.bf16.msra.mxu0 %v997
  %1438 = vmatprep.mubr.bf16.mxu0 %v101
  %1439 = vmatmul.mubr.bf16.gmra.mrb[0].mxu0 %v100
  %v1440 = vpop.f32.mrb[0].mxu0
  %v1441 = vadd.f32 %v1401, %v1440
  %v1442 = vpop.f32.mrb[0].mxu0
  %v1443 = vpop.f32.mrb[0].mxu0
  %v1444 = vpop.f32.mrb[0].mxu0
  %1445 = vdwg.mxu0
  %v1446 = vmul.f32 %v1441, 20.0
  %1447 = vst [vmem:[%s2] sm:$0xff] %v1446
  // Predicated region
  $region10: #{res_classifier_mme.1} parent=0 // pred_check
    _
  $region11: #{res_classifier_mme.1} parent=0 // pred_check_branch
    %1449 = sbr.rel (0) target = $region13
  $region12: #{res_classifier_mme.1} parent=0 // pred_region
    _
  $region13: #{res_classifier_mme.1} parent=0 // pred_fallthru
    _
  // Predicated region
  $region14: #{res_classifier_mme.1} parent=0 // pred_check
    _
  $region15: #{res_classifier_mme.1} parent=0 // pred_check_branch
    %1451 = sbr.rel (0) target = $region17
  $region16: #{res_classifier_mme.1} parent=0 // pred_region
    _
  $region17: #{res_classifier_mme.1} parent=0 // pred_fallthru
    _

</llo_original>
